<compile_context>
chip_gen: v5e
topology: v5e:2x2
jax: 0.10.0
libtpu: 0.0.40
codegen_flags: <defaults>
</compile_context>

<pallas_src>
import functools
import numpy as np
import jax
import jax.numpy as jnp
from jax import lax
from jax.experimental import pallas as pl
from jax.experimental.pallas import tpu as pltpu


def psa_kernel(x_ref, w1_ref, b1_ref, w2_ref, wh_ref, bh_ref, alpha_ref,
               o_ref, qk_ref, v_ref, acc_ref, *, c_in, tq, exp_bf16):
    qi = pl.program_id(1)

    # ---- per-batch init: MLP + packed Q/K/V heads, zero the accumulator ----
    @pl.when(qi == 0)
    def _init():
        x = x_ref[0]                                            # (c_in, N) f32
        # mlp: Conv1d(3->64)+BN(+offset) folded -> ReLU -> Conv1d(64->128)
        h1 = jnp.maximum(
            jnp.dot(w1_ref[...], x, preferred_element_type=jnp.float32)
            + b1_ref[...], 0.0)                                 # (64, N)
        feat = jnp.dot(w2_ref[...], h1.astype(jnp.bfloat16),
                       preferred_element_type=jnp.float32)      # (128, N)
        # packed Q/K/V heads: Conv1d(128->{16,16,c_in})+BN folded -> ReLU
        head = jnp.maximum(
            jnp.dot(wh_ref[...], feat.astype(jnp.bfloat16),
                    preferred_element_type=jnp.float32) + bh_ref[...], 0.0)
        qk_ref[...] = head[0:32].astype(jnp.bfloat16)           # Q:0-16, K:16-32
        v_ref[...] = head[32:32 + c_in]                         # (c_in, N) f32
        acc_ref[...] = jnp.zeros_like(acc_ref)

    # ---- one query tile ----
    q0 = pl.multiple_of(qi * tq, tq)
    q_t = qk_ref[0:16, pl.ds(q0, tq)]                           # (16, TQ) bf16
    k = qk_ref[16:32, :]                                        # (16, N)  bf16

    # energy[i, j] = sum_c Q[c, i] * K[c, j]  (proj_query @ proj_key)
    # TODO(synk): verify in the bundle dump that this dim-0 contraction does
    # not emit an explicit (16, TQ) -> (TQ, 16) vxpose of q_t.
    energy = lax.dot_general(q_t, k, (((0,), (0,)), ((), ())),
                             preferred_element_type=jnp.float32)  # (TQ, N)

    # Stable row-softmax numerator only; normalizations live on tiny vectors.
    m = jnp.max(energy, axis=-1, keepdims=True)                 # (TQ, 1)
    z = energy - m
    e = jnp.exp(z.astype(jnp.bfloat16)) if exp_bf16 else jnp.exp(z)  # (TQ, N)
    row_sum = jnp.sum(e.astype(jnp.float32), axis=-1, keepdims=True)  # (TQ, 1)
    r_row = 1.0 / row_sum                                       # exact divide
    r_row_t = jnp.transpose(r_row)                              # (1, TQ)

    # [V * r_row ; r_row] @ e yields both the un-normalized output rows and
    # the softmax column sums (last row) in a single bf16 MXU matmul.
    v_t = v_ref[:, pl.ds(q0, tq)]                               # (c_in, TQ)
    vaug = jnp.concatenate([v_t * r_row_t, r_row_t], axis=0)    # (c_in+1, TQ)
    acc_ref[...] += jnp.dot(vaug.astype(jnp.bfloat16),
                            e.astype(jnp.bfloat16),
                            preferred_element_type=jnp.float32)  # (c_in+1, N)

    # ---- finalize: column rescale (torch's sum(dim=1) normalization) + residual ----
    @pl.when(qi == pl.num_programs(1) - 1)
    def _finalize():
        alpha = alpha_ref[0, 0]
        acc = acc_ref[...]
        out = acc[0:c_in]                                       # (c_in, N)
        col = acc[c_in:c_in + 1]                                # (1, N)
        r_col = 1.0 / (1e-9 + col)                              # exact divide
        o_ref[0] = (alpha * (out * r_col) + x_ref[0]).astype(o_ref.dtype)


def _full_spec(shape):
    nd = len(shape)
    return pl.BlockSpec(shape, lambda b, q, _nd=nd: (0,) * _nd)


def _device_kind():
    try:
        return jax.devices()[0].device_kind.lower()
    except Exception:
        return ""


def _is_pre_v6():
    k = _device_kind()
    return any(t in k for t in ("v2", "v3", "v4", "v5"))


def _vmem_limit_bytes():
    k = _device_kind()
    if "v7" in k:
        return 48 * 1024 * 1024          # leave headroom under 64 MiB physical
    if any(t in k for t in ("v2", "v3", "v4", "v5", "v6")):
        return 96 * 1024 * 1024          # 128 MiB physical on v5e/v6e
    return 64 * 1024 * 1024              # unknown: conservative


def fold_params(p):
    """Fold eval-mode BN scale/bias and the scalar offset into conv weights."""
    w1f = (p["w1"] * p["s1"]).astype(jnp.float32)                       # (64, 3)
    b1f = p["b1"] + p["offset"][0, 0] * jnp.sum(w1f, axis=1, keepdims=True)
    wq = p["wq"] * p["sq"]
    wk = p["wk"] * p["sk"]
    wv = p["wv"] * p["sv"]
    whead = jnp.concatenate([wq, wk, wv], axis=0).astype(jnp.bfloat16)  # (32+c, 128)
    bhead = jnp.concatenate([p["bq"], p["bk"], p["bv"]], axis=0)        # (32+c, 1)
    return dict(w1=w1f, b1=b1f, w2=p["w2"].astype(jnp.bfloat16),
                wh=whead, bh=bhead, alpha=p["alpha"])


def point_spatial_attention(x, p, *, tq=None):
    B, c_in, N = x.shape
    # Lane-dense fast path only (unmasked vst, full vregs).
    assert N % 128 == 0, "N must be a multiple of 128 (pad + mask otherwise)"
    if tq is None:
        tq = 128
        for cand in (512, 256, 128):
            if N % cand == 0:
                tq = cand
                break
    assert tq % 128 == 0 and N % tq == 0
    nq = N // tq

    fp = fold_params(p)
    exp_bf16 = not _is_pre_v6()

    in_specs = [
        pl.BlockSpec((1, c_in, N), lambda b, q: (b, 0, 0)),      # x
        _full_spec(fp["w1"].shape), _full_spec(fp["b1"].shape),
        _full_spec(fp["w2"].shape),
        _full_spec(fp["wh"].shape), _full_spec(fp["bh"].shape),
        pl.BlockSpec(memory_space=pltpu.MemorySpace.SMEM),       # alpha (scalar)
    ]
    kernel = functools.partial(psa_kernel, c_in=c_in, tq=tq, exp_bf16=exp_bf16)
    return pl.pallas_call(
        kernel,
        out_shape=jax.ShapeDtypeStruct((B, c_in, N), x.dtype),
        grid_spec=pltpu.PrefetchScalarGridSpec(
            num_scalar_prefetch=0,
            grid=(B, nq),
            in_specs=in_specs,
            out_specs=pl.BlockSpec((1, c_in, N), lambda b, q: (b, 0, 0)),
            scratch_shapes=[
                pltpu.VMEM((32, N), jnp.bfloat16),               # packed Q|K
                pltpu.VMEM((c_in, N), jnp.float32),              # V
                pltpu.VMEM((c_in + 1, N), jnp.float32),          # out rows + col sums
            ]),
        compiler_params=pltpu.CompilerParams(
            dimension_semantics=("parallel", "arbitrary"),
            vmem_limit_bytes=_vmem_limit_bytes()),
    )(x, fp["w1"], fp["b1"], fp["w2"], fp["wh"], fp["bh"], fp["alpha"])


def _fold_bn(gamma, beta, rmean, rvar, eps=1e-5):
    scale = gamma / jnp.sqrt(rvar + eps)
    bias = beta - rmean * scale
    return scale[:, None].astype(jnp.float32), bias[:, None].astype(jnp.float32)


def make_params(key, in_dim=3):
    ks = jax.random.split(key, 24)
    it = iter(range(24))

    def nrm(shape, scale=0.1):
        return (scale * jax.random.normal(ks[next(it)], shape)).astype(jnp.float32)

    def bn_params(c):
        gamma = 1.0 + 0.1 * jax.random.normal(ks[next(it)], (c,))
        beta = 0.1 * jax.random.normal(ks[next(it)], (c,))
        rmean = 0.1 * jax.random.normal(ks[next(it)], (c,))
        rvar = jax.random.uniform(ks[next(it)], (c,), minval=0.5, maxval=1.5)
        return _fold_bn(gamma, beta, rmean, rvar)

    w1 = nrm((64, 3))           # Conv1d(3->64, k=1, no bias)
    s1, b1 = bn_params(64)      # bn1
    w2 = nrm((128, 64))         # Conv1d(64->128, k=1, no bias)
    wq = nrm((16, 128))         # query_conv
    sq, bq = bn_params(16)      # bn2
    wk = nrm((16, 128))         # key_conv
    sk, bk = bn_params(16)      # bn3
    wv = nrm((in_dim, 128))     # value_conv
    sv, bv = bn_params(in_dim)  # bn4

    # PyTorch initializes alpha/offset to 0 (which would make out == x);
    # use small nonzero values so the attention path is actually exercised.
    alpha = jnp.array([[0.5]], dtype=jnp.float32)
    offset = jnp.array([[0.1]], dtype=jnp.float32)

    return dict(w1=w1, s1=s1, b1=b1, w2=w2,
                wq=wq, sq=sq, bq=bq,
                wk=wk, sk=sk, bk=bk,
                wv=wv, sv=sv, bv=bv,
                alpha=alpha, offset=offset)


def reference(x, p):
    """Pure-JAX f32 reference matching the PyTorch forward (eval-mode BN)."""
    def conv(w, a):
        return jnp.einsum("oc,bcn->bon", w, a)

    xo = x + p["offset"][0, 0]
    h1 = jnp.maximum(conv(p["w1"], xo) * p["s1"][None] + p["b1"][None], 0.0)
    feat = conv(p["w2"], h1)
    q = jnp.maximum(conv(p["wq"], feat) * p["sq"][None] + p["bq"][None], 0.0)
    k = jnp.maximum(conv(p["wk"], feat) * p["sk"][None] + p["bk"][None], 0.0)
    v = jnp.maximum(conv(p["wv"], feat) * p["sv"][None] + p["bv"][None], 0.0)
    energy = jnp.einsum("bci,bcj->bij", q, k)
    sm = jax.nn.softmax(energy, axis=-1)
    sm = sm / (1e-9 + sm.sum(axis=1, keepdims=True))
    out = jnp.einsum("bck,bkj->bcj", v, sm)
    return p["alpha"][0, 0] * out + x


if __name__ == "__main__":
    B, in_dim, N = 2, 3, 128
    key = jax.random.PRNGKey(0)
    kx, kp = jax.random.split(key)
    x = jax.random.normal(kx, (B, in_dim, N), dtype=jnp.float32)
    params = make_params(kp, in_dim=in_dim)

    out = point_spatial_attention(x, params)
    out = jax.block_until_ready(out)

    ref = jax.block_until_ready(reference(x, params))
    assert out.shape == (B, in_dim, N)
    # bf16 MXU operands (+ bf16 exp on v6e/v7x) vs. pure-f32 reference.
    np.testing.assert_allclose(np.asarray(out), np.asarray(ref), rtol=2e-2, atol=5e-3)
    print("KERNEL_OK")
</pallas_src>

<mosaic_0001>
module attributes {stable_mosaic.version = 11 : i64} {
  func.func @psa_kernel(%arg0: i32, %arg1: i32, %arg2: memref<1x3x128xf32, #tpu.memory_space<vmem>>, %arg3: memref<64x3xf32, #tpu.memory_space<vmem>>, %arg4: memref<64x1xf32, #tpu.memory_space<vmem>>, %arg5: memref<128x64xbf16, #tpu.memory_space<vmem>>, %arg6: memref<35x128xbf16, #tpu.memory_space<vmem>>, %arg7: memref<35x1xf32, #tpu.memory_space<vmem>>, %arg8: memref<1x1xf32, #tpu.memory_space<smem>>, %arg9: memref<1x3x128xf32, #tpu.memory_space<vmem>>, %arg10: memref<32x128xbf16, #tpu.memory_space<vmem>>, %arg11: memref<3x128xf32, #tpu.memory_space<vmem>>, %arg12: memref<4x128xf32, #tpu.memory_space<vmem>>) attributes {dimension_semantics = [#tpu.dimension_semantics<parallel>, #tpu.dimension_semantics<arbitrary>], iteration_bounds = array<i64: 2, 1>, scalar_prefetch = 0 : i64, scratch_operands = 3 : i64, tpu.core_type = #tpu.core_type<tc>, window_params = [{transform_indices = @transform_0, window_bounds = array<i64: 1, 3, 128>}, {pipeline_mode = #tpu.pipeline_mode<synchronous>, transform_indices = @transform_1, window_bounds = array<i64: 64, 3>}, {pipeline_mode = #tpu.pipeline_mode<synchronous>, transform_indices = @transform_2, window_bounds = array<i64: 64, 1>}, {pipeline_mode = #tpu.pipeline_mode<synchronous>, transform_indices = @transform_3, window_bounds = array<i64: 128, 64>}, {pipeline_mode = #tpu.pipeline_mode<synchronous>, transform_indices = @transform_4, window_bounds = array<i64: 35, 128>}, {pipeline_mode = #tpu.pipeline_mode<synchronous>, transform_indices = @transform_5, window_bounds = array<i64: 35, 1>}, {transform_indices = @transform_6, window_bounds = array<i64: 1, 1>}, {transform_indices = @transform_7, window_bounds = array<i64: 1, 3, 128>}]} {
    %c0_i32 = arith.constant 0 : i32
    %0 = arith.cmpi eq, %arg1, %c0_i32 : i32
    %1 = arith.extui %0 : i1 to i32
    %c0_i32_0 = arith.constant 0 : i32
    %2 = arith.cmpi ne, %1, %c0_i32_0 : i32
    scf.if %2 {
      %c0_13 = arith.constant 0 : index
      %c0_14 = arith.constant 0 : index
      %c0_15 = arith.constant 0 : index
      %34 = vector.load %arg2[%c0_13, %c0_14, %c0_15] : memref<1x3x128xf32, #tpu.memory_space<vmem>>, vector<1x3x128xf32>
      %35 = vector.shape_cast %34 : vector<1x3x128xf32> to vector<3x128xf32>
      %c0_16 = arith.constant 0 : index
      %c0_17 = arith.constant 0 : index
      %36 = vector.load %arg3[%c0_16, %c0_17] : memref<64x3xf32, #tpu.memory_space<vmem>>, vector<64x3xf32>
      %cst_18 = arith.constant dense<0.000000e+00> : vector<64x128xf32>
      %37 = tpu.matmul %36, %35, %cst_18 {dimension_numbers = #tpu.dot_dimension_numbers<[1], [0], [0], [1], [0, 0, 1, 1], [], []>} : vector<64x3xf32>, vector<3x128xf32>, vector<64x128xf32> -> vector<64x128xf32>
      %c0_19 = arith.constant 0 : index
      %c0_20 = arith.constant 0 : index
      %38 = vector.load %arg4[%c0_19, %c0_20] : memref<64x1xf32, #tpu.memory_space<vmem>>, vector<64x1xf32>
      %39 = vector.broadcast %38 : vector<64x1xf32> to vector<64x128xf32>
      %40 = arith.addf %37, %39 : vector<64x128xf32>
      %cst_21 = arith.constant 0.000000e+00 : f32
      %41 = vector.broadcast %cst_21 : f32 to vector<64x128xf32>
      %42 = arith.maximumf %40, %41 : vector<64x128xf32>
      %c0_22 = arith.constant 0 : index
      %c0_23 = arith.constant 0 : index
      %43 = vector.load %arg5[%c0_22, %c0_23] : memref<128x64xbf16, #tpu.memory_space<vmem>>, vector<128x64xbf16>
      %44 = arith.truncf %42 : vector<64x128xf32> to vector<64x128xbf16>
      %cst_24 = arith.constant dense<0.000000e+00> : vector<128x128xf32>
      %45 = tpu.matmul %43, %44, %cst_24 {dimension_numbers = #tpu.dot_dimension_numbers<[1], [0], [0], [1], [0, 0, 1, 1], [], []>} : vector<128x64xbf16>, vector<64x128xbf16>, vector<128x128xf32> -> vector<128x128xf32>
      %c0_25 = arith.constant 0 : index
      %c0_26 = arith.constant 0 : index
      %46 = vector.load %arg6[%c0_25, %c0_26] : memref<35x128xbf16, #tpu.memory_space<vmem>>, vector<35x128xbf16>
      %47 = arith.truncf %45 : vector<128x128xf32> to vector<128x128xbf16>
      %cst_27 = arith.constant dense<0.000000e+00> : vector<35x128xf32>
      %48 = tpu.matmul %46, %47, %cst_27 {dimension_numbers = #tpu.dot_dimension_numbers<[1], [0], [0], [1], [0, 0, 1, 1], [], []>} : vector<35x128xbf16>, vector<128x128xbf16>, vector<35x128xf32> -> vector<35x128xf32>
      %c0_28 = arith.constant 0 : index
      %c0_29 = arith.constant 0 : index
      %49 = vector.load %arg7[%c0_28, %c0_29] : memref<35x1xf32, #tpu.memory_space<vmem>>, vector<35x1xf32>
      %50 = vector.broadcast %49 : vector<35x1xf32> to vector<35x128xf32>
      %51 = arith.addf %48, %50 : vector<35x128xf32>
      %cst_30 = arith.constant 0.000000e+00 : f32
      %52 = vector.broadcast %cst_30 : f32 to vector<35x128xf32>
      %53 = arith.maximumf %51, %52 : vector<35x128xf32>
      %54 = vector.extract_strided_slice %53 {offsets = [0, 0], sizes = [32, 128], strides = [1, 1]} : vector<35x128xf32> to vector<32x128xf32>
      %55 = arith.truncf %54 : vector<32x128xf32> to vector<32x128xbf16>
      %c0_31 = arith.constant 0 : index
      %c0_32 = arith.constant 0 : index
      %56 = vector.load %arg10[%c0_31, %c0_32] : memref<32x128xbf16, #tpu.memory_space<vmem>>, vector<32x128xbf16>
      tpu.vector_store %arg10[%c0_31, %c0_32], %55 {strides = array<i32>} : memref<32x128xbf16, #tpu.memory_space<vmem>>, vector<32x128xbf16>,
      %57 = vector.extract_strided_slice %53 {offsets = [32, 0], sizes = [3, 128], strides = [1, 1]} : vector<35x128xf32> to vector<3x128xf32>
      %c0_33 = arith.constant 0 : index
      %c0_34 = arith.constant 0 : index
      %58 = vector.load %arg11[%c0_33, %c0_34] : memref<3x128xf32, #tpu.memory_space<vmem>>, vector<3x128xf32>
      tpu.vector_store %arg11[%c0_33, %c0_34], %57 {strides = array<i32>} : memref<3x128xf32, #tpu.memory_space<vmem>>, vector<3x128xf32>,
      %cst_35 = arith.constant 0.000000e+00 : f32
      %59 = vector.broadcast %cst_35 : f32 to vector<4x128xf32>
      %c0_36 = arith.constant 0 : index
      %c0_37 = arith.constant 0 : index
      %60 = vector.load %arg12[%c0_36, %c0_37] : memref<4x128xf32, #tpu.memory_space<vmem>>, vector<4x128xf32>
      tpu.vector_store %arg12[%c0_36, %c0_37], %59 {strides = array<i32>} : memref<4x128xf32, #tpu.memory_space<vmem>>, vector<4x128xf32>,
    } else {
    }
    %c128_i32 = arith.constant 128 : i32
    %3 = arith.muli %arg1, %c128_i32 : i32
    %4 = tpu.assume_multiple %3, 128 : i32
    %c0 = arith.constant 0 : index
    %5 = arith.index_cast %4 : i32 to index
    %6 = vector.load %arg10[%c0, %5] : memref<32x128xbf16, #tpu.memory_space<vmem>>, vector<16x128xbf16>
    %c16 = arith.constant 16 : index
    %c0_1 = arith.constant 0 : index
    %7 = vector.load %arg10[%c16, %c0_1] : memref<32x128xbf16, #tpu.memory_space<vmem>>, vector<16x128xbf16>
    %cst = arith.constant dense<0.000000e+00> : vector<128x128xf32>
    %8 = tpu.matmul %6, %7, %cst {dimension_numbers = #tpu.dot_dimension_numbers<[0], [0], [1], [1], [0, 1, 1, 1], [], []>} : vector<16x128xbf16>, vector<16x128xbf16>, vector<128x128xf32> -> vector<128x128xf32>
    %cst_2 = arith.constant dense<0xFF800000> : vector<128xf32>
    %9 = vector.multi_reduction <maximumf>, %8, %cst_2 [1] : vector<128x128xf32> to vector<128xf32>
    %10 = vector.shape_cast %9 : vector<128xf32> to vector<128x1xf32>
    %11 = vector.broadcast %10 : vector<128x1xf32> to vector<128x128xf32>
    %12 = arith.subf %8, %11 : vector<128x128xf32>
    %13 = arith.truncf %12 : vector<128x128xf32> to vector<128x128xbf16>
    %14 = math.exp %13 : vector<128x128xbf16>
    %15 = arith.extf %14 : vector<128x128xbf16> to vector<128x128xf32>
    %cst_3 = arith.constant dense<0.000000e+00> : vector<128xf32>
    %16 = vector.multi_reduction <add>, %15, %cst_3 [1] : vector<128x128xf32> to vector<128xf32>
    %17 = vector.shape_cast %16 : vector<128xf32> to vector<128x1xf32>
    %cst_4 = arith.constant 1.000000e+00 : f32
    %18 = vector.broadcast %cst_4 : f32 to vector<128x1xf32>
    %19 = arith.divf %18, %17 : vector<128x1xf32>
    %20 = tpu.transpose %19, [1, 0] : vector<128x1xf32> -> vector<1x128xf32>
    %c0_5 = arith.constant 0 : index
    %21 = arith.index_cast %4 : i32 to index
    %22 = vector.load %arg11[%c0_5, %21] : memref<3x128xf32, #tpu.memory_space<vmem>>, vector<3x128xf32>
    %23 = vector.broadcast %20 : vector<1x128xf32> to vector<3x128xf32>
    %24 = arith.mulf %22, %23 : vector<3x128xf32>
    %25 = tpu.concatenate %24, %20 in 0 : vector<3x128xf32>, vector<1x128xf32> -> vector<4x128xf32>
    %c0_6 = arith.constant 0 : index
    %c0_7 = arith.constant 0 : index
    %26 = vector.load %arg12[%c0_6, %c0_7] : memref<4x128xf32, #tpu.memory_space<vmem>>, vector<4x128xf32>
    %27 = arith.truncf %25 : vector<4x128xf32> to vector<4x128xbf16>
    %cst_8 = arith.constant dense<0.000000e+00> : vector<4x128xf32>
    %28 = tpu.matmul %27, %14, %cst_8 {dimension_numbers = #tpu.dot_dimension_numbers<[1], [0], [0], [1], [0, 0, 1, 1], [], []>} : vector<4x128xbf16>, vector<128x128xbf16>, vector<4x128xf32> -> vector<4x128xf32>
    %29 = arith.addf %26, %28 : vector<4x128xf32>
    %c0_9 = arith.constant 0 : index
    %c0_10 = arith.constant 0 : index
    %30 = vector.load %arg12[%c0_9, %c0_10] : memref<4x128xf32, #tpu.memory_space<vmem>>, vector<4x128xf32>
    tpu.vector_store %arg12[%c0_9, %c0_10], %29 {strides = array<i32>} : memref<4x128xf32, #tpu.memory_space<vmem>>, vector<4x128xf32>,
    %c0_i32_11 = arith.constant 0 : i32
    %31 = arith.cmpi eq, %arg1, %c0_i32_11 : i32
    %32 = arith.extui %31 : i1 to i32
    %c0_i32_12 = arith.constant 0 : i32
    %33 = arith.cmpi ne, %32, %c0_i32_12 : i32
    scf.if %33 {
      %c0_13 = arith.constant 0 : index
      %c0_14 = arith.constant 0 : index
      %34 = memref.load %arg8[%c0_13, %c0_14] : memref<1x1xf32, #tpu.memory_space<smem>>
      %c0_15 = arith.constant 0 : index
      %c0_16 = arith.constant 0 : index
      %35 = vector.load %arg12[%c0_15, %c0_16] : memref<4x128xf32, #tpu.memory_space<vmem>>, vector<4x128xf32>
      %36 = vector.extract_strided_slice %35 {offsets = [0, 0], sizes = [3, 128], strides = [1, 1]} : vector<4x128xf32> to vector<3x128xf32>
      %37 = vector.extract_strided_slice %35 {offsets = [3, 0], sizes = [1, 128], strides = [1, 1]} : vector<4x128xf32> to vector<1x128xf32>
      %cst_17 = arith.constant 9.99999971E-10 : f32
      %38 = vector.broadcast %cst_17 : f32 to vector<1x128xf32>
      %39 = arith.addf %38, %37 : vector<1x128xf32>
      %cst_18 = arith.constant 1.000000e+00 : f32
      %40 = vector.broadcast %cst_18 : f32 to vector<1x128xf32>
      %41 = arith.divf %40, %39 : vector<1x128xf32>
      %42 = vector.broadcast %41 : vector<1x128xf32> to vector<3x128xf32>
      %43 = arith.mulf %36, %42 : vector<3x128xf32>
      %44 = vector.broadcast %34 : f32 to vector<3x128xf32>
      %45 = arith.mulf %44, %43 : vector<3x128xf32>
      %c0_19 = arith.constant 0 : index
      %c0_20 = arith.constant 0 : index
      %c0_21 = arith.constant 0 : index
      %46 = vector.load %arg2[%c0_19, %c0_20, %c0_21] : memref<1x3x128xf32, #tpu.memory_space<vmem>>, vector<1x3x128xf32>
      %47 = vector.shape_cast %46 : vector<1x3x128xf32> to vector<3x128xf32>
      %48 = arith.addf %45, %47 : vector<3x128xf32>
      %c0_22 = arith.constant 0 : index
      %c0_23 = arith.constant 0 : index
      %c0_24 = arith.constant 0 : index
      %49 = vector.load %arg9[%c0_22, %c0_23, %c0_24] : memref<1x3x128xf32, #tpu.memory_space<vmem>>, vector<1x3x128xf32>
      %50 = vector.shape_cast %49 : vector<1x3x128xf32> to vector<3x128xf32>
      %51 = vector.shape_cast %48 : vector<3x128xf32> to vector<1x3x128xf32>
      tpu.vector_store %arg9[%c0_22, %c0_23, %c0_24], %51 {strides = array<i32>} : memref<1x3x128xf32, #tpu.memory_space<vmem>>, vector<1x3x128xf32>,
    } else {
    }
    return
  }
  func.func @transform_0(%arg0: i32, %arg1: i32) -> (i32, i32, i32) {
    %c0_i32 = arith.constant 0 : i32
    %c0_i32_0 = arith.constant 0 : i32
    %c0_i32_1 = arith.constant 0 : i32
    return %arg0, %c0_i32, %c0_i32_0 : i32, i32, i32
  }
  func.func @transform_1(%arg0: i32, %arg1: i32) -> (i32, i32) {
    %c0_i32 = arith.constant 0 : i32
    %c0_i32_0 = arith.constant 0 : i32
    %c0_i32_1 = arith.constant 0 : i32
    return %c0_i32, %c0_i32_0 : i32, i32
  }
  func.func @transform_2(%arg0: i32, %arg1: i32) -> (i32, i32) {
    %c0_i32 = arith.constant 0 : i32
    %c0_i32_0 = arith.constant 0 : i32
    %c0_i32_1 = arith.constant 0 : i32
    return %c0_i32, %c0_i32_0 : i32, i32
  }
  func.func @transform_3(%arg0: i32, %arg1: i32) -> (i32, i32) {
    %c0_i32 = arith.constant 0 : i32
    %c0_i32_0 = arith.constant 0 : i32
    %c0_i32_1 = arith.constant 0 : i32
    return %c0_i32, %c0_i32_0 : i32, i32
  }
  func.func @transform_4(%arg0: i32, %arg1: i32) -> (i32, i32) {
    %c0_i32 = arith.constant 0 : i32
    %c0_i32_0 = arith.constant 0 : i32
    %c0_i32_1 = arith.constant 0 : i32
    return %c0_i32, %c0_i32_0 : i32, i32
  }
  func.func @transform_5(%arg0: i32, %arg1: i32) -> (i32, i32) {
    %c0_i32 = arith.constant 0 : i32
    %c0_i32_0 = arith.constant 0 : i32
    %c0_i32_1 = arith.constant 0 : i32
    return %c0_i32, %c0_i32_0 : i32, i32
  }
  func.func @transform_6(%arg0: i32, %arg1: i32) -> (i32, i32) {
    %c0_i32 = arith.constant 0 : i32
    %c0_i32_0 = arith.constant 0 : i32
    %c0_i32_1 = arith.constant 0 : i32
    return %c0_i32, %c0_i32_0 : i32, i32
  }
  func.func @transform_7(%arg0: i32, %arg1: i32) -> (i32, i32, i32) {
    %c0_i32 = arith.constant 0 : i32
    %c0_i32_0 = arith.constant 0 : i32
    %c0_i32_1 = arith.constant 0 : i32
    return %arg0, %c0_i32, %c0_i32_0 : i32, i32, i32
  }
}

</mosaic_0001>

<llo_original>
// kernel: tpu_custom_call.1
$region0: #{tpu_custom_call.1}
  #allocation0 [shape = 'u32[]', space=smem, size = 0x4, offset = 0x4, fixed_abs, tag = 'smem constant byte address 0x4 - core index']
  #allocation1 [shape = 'u32[72,128]{1,0:T(1,128)}', space=vmem, size = 0x9000, scoped, tag = 'internal scratch']
  #allocation2 [shape = 'bf16[32,128]{1,0:T(8,128)(2,1)}', space=vmem, size = 0x2000, scoped, tag = 'scratch operand']
  #allocation3 [shape = 'f32[3,128]{1,0:T(4,128)}', space=vmem, size = 0x800, scoped, tag = 'scratch operand']
  #allocation4 [shape = 'f32[4,128]{1,0:T(4,128)}', space=vmem, size = 0x800, scoped, tag = 'scratch operand']
  #allocation5 [shape = 'f32[1,1]{1,0:T(1,128)S(6)}', space=smem, size = 0x200, scoped, tag = 'scoped memory for tpu_custom_call.1']
  %s0 = inlined_call_operand.vmem [shape: f32[2,3,128], index: 0, kind: input, shape index: {}]
  %s1 = inlined_call_operand.vmem [shape: f32[64,3], index: 1, kind: input, shape index: {}]
  %s2 = inlined_call_operand.vmem [shape: f32[64,1], index: 2, kind: input, shape index: {}]
  %s3 = inlined_call_operand.vmem [shape: bf16[128,64], index: 3, kind: input, shape index: {}]
  %s4 = inlined_call_operand.vmem [shape: bf16[35,128], index: 4, kind: input, shape index: {}]
  %s5 = inlined_call_operand.vmem [shape: f32[35,1], index: 5, kind: input, shape index: {}]
  %s6 = inlined_call_operand.<no memory space> [shape: f32[1,1], index: 6, kind: input, shape index: {}]
  %s7 = inlined_call_operand.vmem [shape: f32[2,3,128], index: 7, kind: output, shape index: {}]
  %s8 = sld [smem:[#allocation0]]
  $region69: #{tpu_custom_call.1} parent=0
    _
  %s10 = ssub.s32 1, %s8
  %s11 = scalar_select 0, %s10, %s8
  %12 = sst [smem:[#allocation5]] %s6
  loop: start=0, step=1, limit=4
  $region2: #{tpu_custom_call.1} parent=0 // loop_pre_header
    _
  $region3: #{tpu_custom_call.1} parent=0 // loop_header
    %s14 = sphi 0, %s18
    %p15 = scmp.ge.s32.totalorder %s14, 4
    %s21 = sphi 0, %s33
    %s22 = sphi 0, %s29
    %s23 = sphi 0, %s21
    %s24 = sphi 0, %s22
    %s25 = sphi 0, %s23
    %s26 = sphi 0, %s24
    %s36 = sphi 0, %s38
    %s39 = sphi 0, %s36
    %s40 = sphi 0, %s39
    %s56 = sphi 0, %s40
    %s60 = sphi 0, %s60
    %s62 = sphi 0, %s60
    %s63 = sphi 0, %s62
    %s77 = sphi 0, %s63
    %s81 = sphi 0, %s81
    %s83 = sphi 0, %s81
    %s84 = sphi 0, %s83
    %s98 = sphi 0, %s84
    %s102 = sphi 0, %s102
    %s104 = sphi 0, %s102
    %s105 = sphi 0, %s104
    %s119 = sphi 0, %s105
    %s123 = sphi 0, %s123
    %s125 = sphi 0, %s123
    %s126 = sphi 0, %s125
    %s140 = sphi 0, %s126
    %s144 = sphi 0, %s144
    %s146 = sphi 0, %s144
    %s147 = sphi 0, %s146
    %s161 = sphi 0, %s147
    %s165 = sphi 0, %s165
    %s167 = sphi 0, %s165
    %s168 = sphi 0, %s167
    %s182 = sphi 0, %s168
    %s188 = sphi 0, %s190
    %s191 = sphi 0, %s188
    %s192 = sphi 0, %s191
    %s208 = sphi 0, %s192
  $region4: #{tpu_custom_call.1} parent=0 // loop_header_branch
    %17 = sbr.rel (%p15) target = $region8
  $region5: #{tpu_custom_call.1} parent=0 // loop_body
    %s19 = ssub.s32 %s14, 1
    %s20 = ssub.s32 %s14, 2
    %s27 = sadd.s32 1, %s22
    %p28 = scmp.ge.s32.totalorder %s27, 1
    %s29 = scalar_select %p28, 0, %s27
    %s30 = sadd.s32 1, %s21
    %s31 = scalar_select %p28, %s30, %s21
    %p32 = scmp.ge.s32.totalorder %s31, 2
    %s33 = scalar_select %p32, 0, %s31
    %s34 = ssub.s32 %s21, %s33
    %p35 = scmp.eq.s32.totalorder %s34, 0
    %s37 = sadd.s32 %s36, 1
    %s38 = scalar_select %p35, %s36, %s37
    %p41 = pneg %p35
    %p42 = scmp.eq.s32.totalorder %s14, 1
    %p43 = por %p41, %p42
    %p44 = scmp.ne.s32.totalorder %s36, %s39
    %p45 = scmp.eq.s32.totalorder %s14, 0
    %p46 = por %p44, %p45
    %p47 = scmp.ne.s32.totalorder %s36, %s39
    %p48 = scmp.eq.s32.totalorder %s19, 1
    %p49 = por %p47, %p48
    %p50 = scmp.ne.s32.totalorder %s39, %s40
    %p51 = scmp.eq.s32.totalorder %s19, 0
    %p52 = por %p50, %p51
    %p53 = scmp.ne.s32.totalorder %s39, %s40
    %p54 = scmp.eq.s32.totalorder %s20, 1
    %p55 = por %p53, %p54
    %p57 = scmp.ne.s32.totalorder %s40, %s56
    %p58 = scmp.eq.s32.totalorder %s20, 0
    %p59 = por %p57, %p58
    %s61 = sadd.s32 %s60, 1
    %p64 = scmp.eq.s32.totalorder %s14, 1
    %p65 = scmp.ne.s32.totalorder %s60, %s62
    %p66 = scmp.eq.s32.totalorder %s14, 0
    %p67 = por %p65, %p66
    %p68 = scmp.ne.s32.totalorder %s60, %s62
    %p69 = scmp.eq.s32.totalorder %s19, 1
    %p70 = por %p68, %p69
    %p71 = scmp.ne.s32.totalorder %s62, %s63
    %p72 = scmp.eq.s32.totalorder %s19, 0
    %p73 = por %p71, %p72
    %p74 = scmp.ne.s32.totalorder %s62, %s63
    %p75 = scmp.eq.s32.totalorder %s20, 1
    %p76 = por %p74, %p75
    %p78 = scmp.ne.s32.totalorder %s63, %s77
    %p79 = scmp.eq.s32.totalorder %s20, 0
    %p80 = por %p78, %p79
    %s82 = sadd.s32 %s81, 1
    %p85 = scmp.eq.s32.totalorder %s14, 1
    %p86 = scmp.ne.s32.totalorder %s81, %s83
    %p87 = scmp.eq.s32.totalorder %s14, 0
    %p88 = por %p86, %p87
    %p89 = scmp.ne.s32.totalorder %s81, %s83
    %p90 = scmp.eq.s32.totalorder %s19, 1
    %p91 = por %p89, %p90
    %p92 = scmp.ne.s32.totalorder %s83, %s84
    %p93 = scmp.eq.s32.totalorder %s19, 0
    %p94 = por %p92, %p93
    %p95 = scmp.ne.s32.totalorder %s83, %s84
    %p96 = scmp.eq.s32.totalorder %s20, 1
    %p97 = por %p95, %p96
    %p99 = scmp.ne.s32.totalorder %s84, %s98
    %p100 = scmp.eq.s32.totalorder %s20, 0
    %p101 = por %p99, %p100
    %s103 = sadd.s32 %s102, 1
    %p106 = scmp.eq.s32.totalorder %s14, 1
    %p107 = scmp.ne.s32.totalorder %s102, %s104
    %p108 = scmp.eq.s32.totalorder %s14, 0
    %p109 = por %p107, %p108
    %p110 = scmp.ne.s32.totalorder %s102, %s104
    %p111 = scmp.eq.s32.totalorder %s19, 1
    %p112 = por %p110, %p111
    %p113 = scmp.ne.s32.totalorder %s104, %s105
    %p114 = scmp.eq.s32.totalorder %s19, 0
    %p115 = por %p113, %p114
    %p116 = scmp.ne.s32.totalorder %s104, %s105
    %p117 = scmp.eq.s32.totalorder %s20, 1
    %p118 = por %p116, %p117
    %p120 = scmp.ne.s32.totalorder %s105, %s119
    %p121 = scmp.eq.s32.totalorder %s20, 0
    %p122 = por %p120, %p121
    %s124 = sadd.s32 %s123, 1
    %p127 = scmp.eq.s32.totalorder %s14, 1
    %p128 = scmp.ne.s32.totalorder %s123, %s125
    %p129 = scmp.eq.s32.totalorder %s14, 0
    %p130 = por %p128, %p129
    %p131 = scmp.ne.s32.totalorder %s123, %s125
    %p132 = scmp.eq.s32.totalorder %s19, 1
    %p133 = por %p131, %p132
    %p134 = scmp.ne.s32.totalorder %s125, %s126
    %p135 = scmp.eq.s32.totalorder %s19, 0
    %p136 = por %p134, %p135
    %p137 = scmp.ne.s32.totalorder %s125, %s126
    %p138 = scmp.eq.s32.totalorder %s20, 1
    %p139 = por %p137, %p138
    %p141 = scmp.ne.s32.totalorder %s126, %s140
    %p142 = scmp.eq.s32.totalorder %s20, 0
    %p143 = por %p141, %p142
    %s145 = sadd.s32 %s144, 1
    %p148 = scmp.eq.s32.totalorder %s14, 1
    %p149 = scmp.ne.s32.totalorder %s144, %s146
    %p150 = scmp.eq.s32.totalorder %s14, 0
    %p151 = por %p149, %p150
    %p152 = scmp.ne.s32.totalorder %s144, %s146
    %p153 = scmp.eq.s32.totalorder %s19, 1
    %p154 = por %p152, %p153
    %p155 = scmp.ne.s32.totalorder %s146, %s147
    %p156 = scmp.eq.s32.totalorder %s19, 0
    %p157 = por %p155, %p156
    %p158 = scmp.ne.s32.totalorder %s146, %s147
    %p159 = scmp.eq.s32.totalorder %s20, 1
    %p160 = por %p158, %p159
    %p162 = scmp.ne.s32.totalorder %s147, %s161
    %p163 = scmp.eq.s32.totalorder %s20, 0
    %p164 = por %p162, %p163
    %s166 = sadd.s32 %s165, 1
    %p169 = scmp.eq.s32.totalorder %s14, 1
    %p170 = scmp.ne.s32.totalorder %s165, %s167
    %p171 = scmp.eq.s32.totalorder %s14, 0
    %p172 = por %p170, %p171
    %p173 = scmp.ne.s32.totalorder %s165, %s167
    %p174 = scmp.eq.s32.totalorder %s19, 1
    %p175 = por %p173, %p174
    %p176 = scmp.ne.s32.totalorder %s167, %s168
    %p177 = scmp.eq.s32.totalorder %s19, 0
    %p178 = por %p176, %p177
    %p179 = scmp.ne.s32.totalorder %s167, %s168
    %p180 = scmp.eq.s32.totalorder %s20, 1
    %p181 = por %p179, %p180
    %p183 = scmp.ne.s32.totalorder %s168, %s182
    %p184 = scmp.eq.s32.totalorder %s20, 0
    %p185 = por %p183, %p184
    %s186 = ssub.s32 %s21, %s33
    %p187 = scmp.eq.s32.totalorder %s186, 0
    %s189 = sadd.s32 %s188, 1
    %s190 = scalar_select %p187, %s188, %s189
    %p193 = pneg %p187
    %p194 = scmp.eq.s32.totalorder %s14, 1
    %p195 = por %p193, %p194
    %p196 = scmp.ne.s32.totalorder %s188, %s191
    %p197 = scmp.eq.s32.totalorder %s14, 0
    %p198 = por %p196, %p197
    %p199 = scmp.ne.s32.totalorder %s188, %s191
    %p200 = scmp.eq.s32.totalorder %s19, 1
    %p201 = por %p199, %p200
    %p202 = scmp.ne.s32.totalorder %s191, %s192
    %p203 = scmp.eq.s32.totalorder %s19, 0
    %p204 = por %p202, %p203
    %p205 = scmp.ne.s32.totalorder %s191, %s192
    %p206 = scmp.eq.s32.totalorder %s20, 1
    %p207 = por %p205, %p206
    %p209 = scmp.ne.s32.totalorder %s192, %s208
    %p210 = scmp.eq.s32.totalorder %s20, 0
    %p211 = por %p209, %p210
    %p212 = scmp.le.s32.totalorder 1, %s14
    %p213 = scmp.lt.s32.totalorder %s14, 3
    %p214 = pnand %p212, %p213
    %p215 = pneg %p214
    // Predicated region
    $region9: #{tpu_custom_call.1} parent=5 // pred_check
      _
    $region10: #{tpu_custom_call.1} parent=5 // pred_check_branch
      %217 = sbr.rel (%p214) target = $region12
    $region11: #{tpu_custom_call.1} parent=5 // pred_region
      %s218 = ssub.s32 %s14, 1
      // Predicated region
      $region13: #{tpu_custom_call.1} parent=11 // pred_check
        %p219 = pneg %p73
      $region14: #{tpu_custom_call.1} parent=11 // pred_check_branch
        %221 = sbr.rel (%p219) target = $region16
      $region15: #{tpu_custom_call.1} parent=11 // pred_region
        _
      $region16: #{tpu_custom_call.1} parent=11 // pred_fallthru
        _
      // Predicated region
      $region17: #{tpu_custom_call.1} parent=11 // pred_check
        %p222 = pneg %p94
      $region18: #{tpu_custom_call.1} parent=11 // pred_check_branch
        %224 = sbr.rel (%p222) target = $region20
      $region19: #{tpu_custom_call.1} parent=11 // pred_region
        _
      $region20: #{tpu_custom_call.1} parent=11 // pred_fallthru
        _
      // Predicated region
      $region21: #{tpu_custom_call.1} parent=11 // pred_check
        %p225 = pneg %p115
      $region22: #{tpu_custom_call.1} parent=11 // pred_check_branch
        %227 = sbr.rel (%p225) target = $region24
      $region23: #{tpu_custom_call.1} parent=11 // pred_region
        _
      $region24: #{tpu_custom_call.1} parent=11 // pred_fallthru
        _
      // Predicated region
      $region25: #{tpu_custom_call.1} parent=11 // pred_check
        %p228 = pneg %p136
      $region26: #{tpu_custom_call.1} parent=11 // pred_check_branch
        %230 = sbr.rel (%p228) target = $region28
      $region27: #{tpu_custom_call.1} parent=11 // pred_region
        _
      $region28: #{tpu_custom_call.1} parent=11 // pred_fallthru
        _
      // Predicated region
      $region29: #{tpu_custom_call.1} parent=11 // pred_check
        %p231 = pneg %p157
      $region30: #{tpu_custom_call.1} parent=11 // pred_check_branch
        %233 = sbr.rel (%p231) target = $region32
      $region31: #{tpu_custom_call.1} parent=11 // pred_region
        _
      $region32: #{tpu_custom_call.1} parent=11 // pred_fallthru
        _
      // Predicated region
      $region33: #{tpu_custom_call.1} parent=11 // pred_check
        %p234 = pneg %p178
      $region34: #{tpu_custom_call.1} parent=11 // pred_check_branch
        %236 = sbr.rel (%p234) target = $region36
      $region35: #{tpu_custom_call.1} parent=11 // pred_region
        _
      $region36: #{tpu_custom_call.1} parent=11 // pred_fallthru
        _
    $region12: #{tpu_custom_call.1} parent=5 // pred_fallthru
      _
    %p237 = scmp.lt.s32.totalorder %s14, 2
    // Predicated region
    $region37: #{tpu_custom_call.1} parent=5 // pred_check
      %p238 = pneg %p237
    $region38: #{tpu_custom_call.1} parent=5 // pred_check_branch
      %240 = sbr.rel (%p238) target = $region40
    $region39: #{tpu_custom_call.1} parent=5 // pred_region
      // Predicated region
      $region41: #{tpu_custom_call.1} parent=39 // pred_check
        %p241 = pneg %p46
      $region42: #{tpu_custom_call.1} parent=39 // pred_check_branch
        %243 = sbr.rel (%p241) target = $region44
      $region43: #{tpu_custom_call.1} parent=39 // pred_region
        %p244 = scmp.lt.s32.totalorder %s21, 1
        %s245 = scalar_select %p244, %s21, 1
        %s246 = smul.addr %s245, 4
        %s247 = scalar_lea.vmem %s0, %s246
      $region44: #{tpu_custom_call.1} parent=39 // pred_fallthru
        _
    $region40: #{tpu_custom_call.1} parent=5 // pred_fallthru
      _
    %p248 = scmp.le.s32.totalorder 1, %s14
    %p249 = scmp.lt.s32.totalorder %s14, 3
    %p250 = pnand %p248, %p249
    %p251 = pneg %p250
    // Predicated region
    $region45: #{tpu_custom_call.1} parent=5 // pred_check
      _
    $region46: #{tpu_custom_call.1} parent=5 // pred_check_branch
      %253 = sbr.rel (%p250) target = $region48
    $region47: #{tpu_custom_call.1} parent=5 // pred_region
      %s254 = ssub.s32 %s14, 1
      %p255 = scmp.lt.s32.totalorder %s23, 1
      %s256 = scalar_select %p255, %s23, 1
      %s257 = smul.addr %s256, 4
      %s258 = scalar_lea.vmem %s0, %s257
      %p259 = pneg %p52
      %p260 = pneg %p49
      %p261 = pneg %p73
      %p262 = pneg %p70
      %p263 = pneg %p94
      %p264 = pneg %p91
      %p265 = pneg %p115
      %p266 = pneg %p112
      %p267 = pneg %p136
      %p268 = pneg %p133
      %p269 = pneg %p157
      %p270 = pneg %p154
      %p271 = pneg %p178
      %p272 = pneg %p175
      %p273 = pneg %p204
      %p274 = pneg %p201
      %p275 = scmp.lt.s32.totalorder %s23, 1
      %s276 = scalar_select %p275, %s23, 1
      %s277 = smul.addr %s276, 4
      %s278 = scalar_lea.vmem %s7, %s277
      %p279 = scmp.lt.s32.totalorder %s23, 1
      %s280 = scalar_select %p279, %s23, 1
      %s281 = smul.addr %s280, 4
      %s282 = scalar_lea.vmem %s0, %s281
      %p283 = scmp.lt.s32.totalorder %s23, 1
      %s284 = scalar_select %p283, %s23, 1
      %s285 = smul.addr %s284, 4
      %s286 = scalar_lea.vmem %s7, %s285
      %p288 = scmp.eq.s32.totalorder %s24, 0
      // Predicated region
      $region49: #{tpu_custom_call.1} parent=47 // pred_check
        %p289 = pneg %p288
      $region50: #{tpu_custom_call.1} parent=47 // pred_check_branch
        %291 = sbr.rel (%p289) target = $region52
      $region51: #{tpu_custom_call.1} parent=47 // pred_region
        %v292 = vld [vmem:[%s282] sm:$0x7]
        %v293 = vld [vmem:[%s1] sm:$0xff]
        %v294 = vld [vmem:[%s1 + $0x8] sm:$0xff]
        %v295 = vld [vmem:[%s1 + $0x10] sm:$0xff]
        %v296 = vld [vmem:[%s1 + $0x18] sm:$0xff]
        %v297 = vld [vmem:[%s1 + $0x20] sm:$0xff]
        %v298 = vld [vmem:[%s1 + $0x28] sm:$0xff]
        %v299 = vld [vmem:[%s1 + $0x30] sm:$0xff]
        %v300 = vld [vmem:[%s1 + $0x38] sm:$0xff]
        %v301 = vld [vmem:[%s2] sm:$0xff]
        %v302 = vld [vmem:[%s2 + $0x8] sm:$0xff]
        %v303 = vld [vmem:[%s2 + $0x10] sm:$0xff]
        %v304 = vld [vmem:[%s2 + $0x18] sm:$0xff]
        %v305 = vld [vmem:[%s2 + $0x20] sm:$0xff]
        %v306 = vld [vmem:[%s2 + $0x28] sm:$0xff]
        %v307 = vld [vmem:[%s2 + $0x30] sm:$0xff]
        %v308 = vld [vmem:[%s2 + $0x38] sm:$0xff]
        %310 = vset.pattern.permute.xlu0 0
        %311 = vperm.xlu0 %310, %v301
        %v312 = vpop.permute.xlu0 %311
        %315 = vset.pattern.permute.xlu0 0
        %316 = vperm.xlu0 %315, %v302
        %v317 = vpop.permute.xlu0 %316
        %320 = vset.pattern.permute.xlu0 0
        %321 = vperm.xlu0 %320, %v303
        %v322 = vpop.permute.xlu0 %321
        %325 = vset.pattern.permute.xlu0 0
        %326 = vperm.xlu0 %325, %v304
        %v327 = vpop.permute.xlu0 %326
        %330 = vset.pattern.permute.xlu0 0
        %331 = vperm.xlu0 %330, %v305
        %v332 = vpop.permute.xlu0 %331
        %335 = vset.pattern.permute.xlu0 0
        %336 = vperm.xlu0 %335, %v306
        %v337 = vpop.permute.xlu0 %336
        %340 = vset.pattern.permute.xlu0 0
        %341 = vperm.xlu0 %340, %v307
        %v342 = vpop.permute.xlu0 %341
        %345 = vset.pattern.permute.xlu0 0
        %346 = vperm.xlu0 %345, %v308
        %v347 = vpop.permute.xlu0 %346
        %vm349 = vcmask 23552
        %v351 = vsel %vm349, %v293, 0
        %v354 = vsel %vm349, %v294, 0
        %v357 = vsel %vm349, %v295, 0
        %v360 = vsel %vm349, %v296, 0
        %v363 = vsel %vm349, %v297, 0
        %v366 = vsel %vm349, %v298, 0
        %v369 = vsel %vm349, %v299, 0
        %v372 = vsel %vm349, %v300, 0
        %vm374 = vcmask 1042432
        %v376 = vsel %vm374, %v292, 0
        %378 = vmatpush.msra.mxu0 0.0
        %379 = vmatpush.msra.mxu0 0.0
        %380 = vmatpush.msra.mxu0 0.0
        %381 = vmatpush.msra.mxu0 0.0
        %382 = vmatpush.msra.mxu0 0.0
        %383 = vmatpush.msra.mxu0 0.0
        %384 = vmatpush.msra.mxu0 0.0
        %385 = vmatpush.msra.mxu0 0.0
        %386 = vmatpush.msra.mxu0 0.0
        %387 = vmatpush.msra.mxu0 0.0
        %388 = vmatpush.msra.mxu0 0.0
        %389 = vmatpush.msra.mxu0 0.0
        %390 = vmatpush.msra.mxu0 0.0
        %391 = vmatpush.msra.mxu0 0.0
        %392 = vmatpush.msra.mxu0 0.0
        %393 = vmatpush.msra.mxu0 %v376
        %394 = vmatmul.f32.gmra.mxu0 %v351
        %v395 = vpop.f32.mrf.mxu0
        %v396 = vadd.f32 %v312, %v395
        %397 = vmatmul.f32.gmra.mxu0 %v354
        %v398 = vpop.f32.mrf.mxu0
        %v399 = vadd.f32 %v317, %v398
        %400 = vmatmul.f32.gmra.mxu0 %v357
        %v401 = vpop.f32.mrf.mxu0
        %v402 = vadd.f32 %v322, %v401
        %403 = vmatmul.f32.gmra.mxu0 %v360
        %v404 = vpop.f32.mrf.mxu0
        %v405 = vadd.f32 %v327, %v404
        %406 = vmatmul.f32.gmra.mxu0 %v363
        %v407 = vpop.f32.mrf.mxu0
        %v408 = vadd.f32 %v332, %v407
        %409 = vmatmul.f32.gmra.mxu0 %v366
        %v410 = vpop.f32.mrf.mxu0
        %v411 = vadd.f32 %v337, %v410
        %412 = vmatmul.f32.gmra.mxu0 %v369
        %v413 = vpop.f32.mrf.mxu0
        %v414 = vadd.f32 %v342, %v413
        %415 = vmatmul.f32.gmra.mxu0 %v372
        %v416 = vpop.f32.mrf.mxu0
        %v417 = vadd.f32 %v347, %v416
        %418 = vdwg.mxu0
        %v419 = vmax.f32 %v396, 0.0
        %v420 = vmax.f32 %v399, 0.0
        %v421 = vmax.f32 %v402, 0.0
        %v422 = vmax.f32 %v405, 0.0
        %v423 = vmax.f32 %v408, 0.0
        %v424 = vmax.f32 %v411, 0.0
        %v425 = vmax.f32 %v414, 0.0
        %v426 = vmax.f32 %v417, 0.0
        %v427 = vld [vmem:[%s3] sm:$0xf]
        %v428 = vld [vmem:[%s3 + $0x4] sm:$0xf]
        %v429 = vld [vmem:[%s3 + $0x8] sm:$0xf]
        %v430 = vld [vmem:[%s3 + $0xc] sm:$0xf]
        %v431 = vld [vmem:[%s3 + $0x10] sm:$0xf]
        %v432 = vld [vmem:[%s3 + $0x14] sm:$0xf]
        %v433 = vld [vmem:[%s3 + $0x18] sm:$0xf]
        %v434 = vld [vmem:[%s3 + $0x1c] sm:$0xf]
        %v435 = vld [vmem:[%s3 + $0x20] sm:$0xf]
        %v436 = vld [vmem:[%s3 + $0x24] sm:$0xf]
        %v437 = vld [vmem:[%s3 + $0x28] sm:$0xf]
        %v438 = vld [vmem:[%s3 + $0x2c] sm:$0xf]
        %v439 = vld [vmem:[%s3 + $0x30] sm:$0xf]
        %v440 = vld [vmem:[%s3 + $0x34] sm:$0xf]
        %v441 = vld [vmem:[%s3 + $0x38] sm:$0xf]
        %v442 = vld [vmem:[%s3 + $0x3c] sm:$0xf]
        %v443 = vpack.c.bf16 %v420, %v419
        %v444 = vpack.c.bf16 %v422, %v421
        %v445 = vpack.c.bf16 %v424, %v423
        %v446 = vpack.c.bf16 %v426, %v425
        %v463 = vunpack.c.l.b16 %v427
        %v464 = vunpack.c.l.b16 %v428
        %v465 = vunpack.c.l.b16 %v429
        %v466 = vunpack.c.l.b16 %v430
        %v467 = vunpack.c.l.b16 %v431
        %v468 = vunpack.c.l.b16 %v432
        %v469 = vunpack.c.l.b16 %v433
        %v470 = vunpack.c.l.b16 %v434
        %v471 = vunpack.c.l.b16 %v435
        %v472 = vunpack.c.l.b16 %v436
        %v473 = vunpack.c.l.b16 %v437
        %v474 = vunpack.c.l.b16 %v438
        %v475 = vunpack.c.l.b16 %v439
        %v476 = vunpack.c.l.b16 %v440
        %v477 = vunpack.c.l.b16 %v441
        %v478 = vunpack.c.l.b16 %v442
        %v479 = vpack.c.b16 %v464, %v463
        %v480 = vpack.c.b16 %v466, %v465
        %v481 = vpack.c.b16 %v468, %v467
        %v482 = vpack.c.b16 %v470, %v469
        %v483 = vpack.c.b16 %v472, %v471
        %v484 = vpack.c.b16 %v474, %v473
        %v485 = vpack.c.b16 %v476, %v475
        %v486 = vpack.c.b16 %v478, %v477
        %vm487 = vcmask 523264
        %v489 = vsel %vm487, %v479, 0
        %v492 = vsel %vm487, %v480, 0
        %v495 = vsel %vm487, %v481, 0
        %v498 = vsel %vm487, %v482, 0
        %v501 = vsel %vm487, %v483, 0
        %v504 = vsel %vm487, %v484, 0
        %v507 = vsel %vm487, %v485, 0
        %v510 = vsel %vm487, %v486, 0
        %512 = vmatpush.bf16.msra.mxu0 0
        %513 = vmatpush.bf16.msra.mxu0 0
        %514 = vmatpush.bf16.msra.mxu0 0
        %515 = vmatpush.bf16.msra.mxu0 0
        %516 = vmatpush.bf16.msra.mxu0 %v446
        %517 = vmatpush.bf16.msra.mxu0 %v445
        %518 = vmatpush.bf16.msra.mxu0 %v444
        %519 = vmatpush.bf16.msra.mxu0 %v443
        %520 = vmatmul.bf16.gmra.mxu0 %v489
        %v521 = vpop.f32.mrf.mxu0
        %v522 = vadd.f32 0.0, %v521
        %v523 = vpop.f32.mrf.mxu0
        %v524 = vadd.f32 0.0, %v523
        %525 = vmatmul.bf16.gmra.mxu0 %v492
        %v526 = vpop.f32.mrf.mxu0
        %v527 = vadd.f32 0.0, %v526
        %v528 = vpop.f32.mrf.mxu0
        %v529 = vadd.f32 0.0, %v528
        %530 = vmatmul.bf16.gmra.mxu0 %v495
        %v531 = vpop.f32.mrf.mxu0
        %v532 = vadd.f32 0.0, %v531
        %v533 = vpop.f32.mrf.mxu0
        %v534 = vadd.f32 0.0, %v533
        %535 = vmatmul.bf16.gmra.mxu0 %v498
        %v536 = vpop.f32.mrf.mxu0
        %v537 = vadd.f32 0.0, %v536
        %v538 = vpop.f32.mrf.mxu0
        %v539 = vadd.f32 0.0, %v538
        %540 = vmatmul.bf16.gmra.mxu0 %v501
        %v541 = vpop.f32.mrf.mxu0
        %v542 = vadd.f32 0.0, %v541
        %v543 = vpop.f32.mrf.mxu0
        %v544 = vadd.f32 0.0, %v543
        %545 = vmatmul.bf16.gmra.mxu0 %v504
        %v546 = vpop.f32.mrf.mxu0
        %v547 = vadd.f32 0.0, %v546
        %v548 = vpop.f32.mrf.mxu0
        %v549 = vadd.f32 0.0, %v548
        %550 = vmatmul.bf16.gmra.mxu0 %v507
        %v551 = vpop.f32.mrf.mxu0
        %v552 = vadd.f32 0.0, %v551
        %v553 = vpop.f32.mrf.mxu0
        %v554 = vadd.f32 0.0, %v553
        %555 = vmatmul.bf16.gmra.mxu0 %v510
        %v556 = vpop.f32.mrf.mxu0
        %v557 = vadd.f32 0.0, %v556
        %v558 = vpop.f32.mrf.mxu0
        %v559 = vadd.f32 0.0, %v558
        %560 = vdwg.mxu0
        %v561 = vld [vmem:[%s4] sm:$0xf]
        %v562 = vld [vmem:[%s4 + $0x4] sm:$0xf]
        %v563 = vld [vmem:[%s4 + $0x8] sm:$0xf]
        %v564 = vld [vmem:[%s4 + $0xc] sm:$0xf]
        %v565 = vld [vmem:[%s4 + $0x10] sm:$0x3]
        %v566 = vpack.c.bf16 %v524, %v522
        %v567 = vpack.c.bf16 %v529, %v527
        %v568 = vpack.c.bf16 %v534, %v532
        %v569 = vpack.c.bf16 %v539, %v537
        %v570 = vpack.c.bf16 %v544, %v542
        %v571 = vpack.c.bf16 %v549, %v547
        %v572 = vpack.c.bf16 %v554, %v552
        %v573 = vpack.c.bf16 %v559, %v557
        %v574 = vld [vmem:[%s5] sm:$0xff]
        %v575 = vld [vmem:[%s5 + $0x8] sm:$0xff]
        %v576 = vld [vmem:[%s5 + $0x10] sm:$0xff]
        %v577 = vld [vmem:[%s5 + $0x18] sm:$0xff]
        %v578 = vld [vmem:[%s5 + $0x20] sm:$0x7]
        %580 = vset.pattern.permute.xlu0 0
        %581 = vperm.xlu0 %580, %v574
        %v582 = vpop.permute.xlu0 %581
        %585 = vset.pattern.permute.xlu0 0
        %586 = vperm.xlu0 %585, %v575
        %v587 = vpop.permute.xlu0 %586
        %590 = vset.pattern.permute.xlu0 0
        %591 = vperm.xlu0 %590, %v576
        %v592 = vpop.permute.xlu0 %591
        %595 = vset.pattern.permute.xlu0 0
        %596 = vperm.xlu0 %595, %v577
        %v597 = vpop.permute.xlu0 %596
        %600 = vset.pattern.permute.xlu0 0
        %601 = vperm.xlu0 %600, %v578
        %v602 = vpop.permute.xlu0 %601
        %v609 = vunpack.c.l.b16 %v561
        %v610 = vunpack.c.l.b16 %v562
        %v611 = vunpack.c.l.b16 %v563
        %v612 = vunpack.c.l.b16 %v564
        %v613 = vunpack.c.l.b16 %v565
        %v614 = vpack.c.b16 %v610, %v609
        %v615 = vpack.c.b16 %v612, %v611
        %v616 = vpack.c.b16 %v613, %v613
        %620 = vmatpush.bf16.msra.mxu0 %v573
        %621 = vmatpush.bf16.msra.mxu0 %v572
        %622 = vmatpush.bf16.msra.mxu0 %v571
        %623 = vmatpush.bf16.msra.mxu0 %v570
        %624 = vmatpush.bf16.msra.mxu0 %v569
        %625 = vmatpush.bf16.msra.mxu0 %v568
        %626 = vmatpush.bf16.msra.mxu0 %v567
        %627 = vmatpush.bf16.msra.mxu0 %v566
        %628 = vmatmul.bf16.gmra.mxu0 %v614
        %v629 = vpop.f32.mrf.mxu0
        %v630 = vadd.f32 %v582, %v629
        %v631 = vpop.f32.mrf.mxu0
        %v632 = vadd.f32 %v587, %v631
        %633 = vmatmul.bf16.gmra.mxu0 %v615
        %v634 = vpop.f32.mrf.mxu0
        %v635 = vadd.f32 %v592, %v634
        %v636 = vpop.f32.mrf.mxu0
        %v637 = vadd.f32 %v597, %v636
        %638 = vmatmul.bf16.gmra.mxu0 %v616
        %v639 = vpop.f32.mrf.mxu0
        %v640 = vadd.f32 %v602, %v639
        %v641 = vpop.f32.mrf.mxu0
        %642 = vdwg.mxu0
        %v643 = vmax.f32 %v630, 0.0
        %v644 = vmax.f32 %v632, 0.0
        %v645 = vmax.f32 %v635, 0.0
        %v646 = vmax.f32 %v637, 0.0
        %v647 = vmax.f32 %v640, 0.0
        %v648 = vpack.c.bf16 %v643, %v643
        %v649 = vpack.c.bf16 %v644, %v644
        %v650 = vpack.c.bf16 %v645, %v645
        %v651 = vpack.c.bf16 %v646, %v646
        %652 = vst [vmem:[#allocation2] sm:$0xf] %v648
        %653 = vst [vmem:[#allocation2 + $0x4] sm:$0xf] %v649
        %654 = vst [vmem:[#allocation2 + $0x8] sm:$0xf] %v650
        %655 = vst [vmem:[#allocation2 + $0xc] sm:$0xf] %v651
        %656 = vst [vmem:[#allocation3] sm:$0x7] %v647
        %657 = vst [vmem:[#allocation4] sm:$0xf] 0.0
      $region52: #{tpu_custom_call.1} parent=47 // pred_fallthru
        _
      %s658 = smul.u32 %s24, 128
      %s659 = sshra.s32 %s658, 7
      %s660 = sand.u32 %s658, 127
      %s661 = smul.addr %s659, 4
      %s662 = scalar_lea.vmem [#allocation2], %s661
      %v663 = vld [vmem:[%s662] sm:$0xf]
      %v664 = vld [vmem:[%s662 + $0x4] sm:$0xf]
      %v665 = vld [vmem:[#allocation2 + $0x8] sm:$0xf]
      %v666 = vld [vmem:[#allocation2 + $0xc] sm:$0xf]
      %v669 = vunpack.c.l.b16 %v663
      %v670 = vunpack.c.l.b16 %v664
      %v671 = vpack.c.b16 %v670, %v669
      %673 = vxpose.xlu0.c.b16.start [1/8] %v671, 128
      %674 = vxpose.xlu0.c.b16.cont [2/8] 0, 128
      %675 = vxpose.xlu0.c.b16.cont [3/8] 0, 128
      %676 = vxpose.xlu0.c.b16.cont [4/8] 0, 128
      %677 = vxpose.xlu0.c.b16.cont [5/8] 0, 128
      %678 = vxpose.xlu0.c.b16.cont [6/8] 0, 128
      %679 = vxpose.xlu0.c.b16.cont [7/8] 0, 128
      %680 = vxpose.xlu0.c.b16.end [8/8] 0, 128
      %v681 = vpop.trf.xlu0
      %v682 = vpop.trf.xlu0
      %v683 = vpop.trf.xlu0
      %v684 = vpop.trf.xlu0
      %v685 = vpop.trf.xlu0
      %v686 = vpop.trf.xlu0
      %v687 = vpop.trf.xlu0
      %v688 = vpop.trf.xlu0
      %v691 = vunpack.c.l.b16 %v665
      %v692 = vunpack.c.l.b16 %v666
      %v693 = vpack.c.b16 %v692, %v691
      %vm695 = vcmask 130048
      %v697 = vsel %vm695, %v681, 0
      %v700 = vsel %vm695, %v682, 0
      %v703 = vsel %vm695, %v683, 0
      %v706 = vsel %vm695, %v684, 0
      %v709 = vsel %vm695, %v685, 0
      %v712 = vsel %vm695, %v686, 0
      %v715 = vsel %vm695, %v687, 0
      %v718 = vsel %vm695, %v688, 0
      %720 = vmatpush.bf16.msra.mxu0 0
      %721 = vmatpush.bf16.msra.mxu0 0
      %722 = vmatpush.bf16.msra.mxu0 0
      %723 = vmatpush.bf16.msra.mxu0 0
      %724 = vmatpush.bf16.msra.mxu0 0
      %725 = vmatpush.bf16.msra.mxu0 0
      %726 = vmatpush.bf16.msra.mxu0 0
      %727 = vmatpush.bf16.msra.mxu0 %v693
      %728 = vmatmul.bf16.gmra.mxu0 %v697
      %v729 = vpop.f32.mrf.mxu0
      %v730 = vadd.f32 0.0, %v729
      %v731 = vpop.f32.mrf.mxu0
      %v732 = vadd.f32 0.0, %v731
      %733 = vmatmul.bf16.gmra.mxu0 %v700
      %v734 = vpop.f32.mrf.mxu0
      %v735 = vadd.f32 0.0, %v734
      %v736 = vpop.f32.mrf.mxu0
      %v737 = vadd.f32 0.0, %v736
      %738 = vmatmul.bf16.gmra.mxu0 %v703
      %v739 = vpop.f32.mrf.mxu0
      %v740 = vadd.f32 0.0, %v739
      %v741 = vpop.f32.mrf.mxu0
      %v742 = vadd.f32 0.0, %v741
      %743 = vmatmul.bf16.gmra.mxu0 %v706
      %v744 = vpop.f32.mrf.mxu0
      %v745 = vadd.f32 0.0, %v744
      %v746 = vpop.f32.mrf.mxu0
      %v747 = vadd.f32 0.0, %v746
      %748 = vmatmul.bf16.gmra.mxu0 %v709
      %v749 = vpop.f32.mrf.mxu0
      %v750 = vadd.f32 0.0, %v749
      %v751 = vpop.f32.mrf.mxu0
      %v752 = vadd.f32 0.0, %v751
      %753 = vmatmul.bf16.gmra.mxu0 %v712
      %v754 = vpop.f32.mrf.mxu0
      %v755 = vadd.f32 0.0, %v754
      %v756 = vpop.f32.mrf.mxu0
      %v757 = vadd.f32 0.0, %v756
      %758 = vmatmul.bf16.gmra.mxu0 %v715
      %v759 = vpop.f32.mrf.mxu0
      %v760 = vadd.f32 0.0, %v759
      %v761 = vpop.f32.mrf.mxu0
      %v762 = vadd.f32 0.0, %v761
      %763 = vmatmul.bf16.gmra.mxu0 %v718
      %v764 = vpop.f32.mrf.mxu0
      %v765 = vadd.f32 0.0, %v764
      %v766 = vpop.f32.mrf.mxu0
      %v767 = vadd.f32 0.0, %v766
      %768 = vdwg.mxu0
      %769 = vmax.xlane.f32.xlu0 %v730
      %v770 = vpop.xlane.xlu0 %769
      %771 = vmax.xlane.f32.xlu0 %v732
      %v772 = vpop.xlane.xlu0 %771
      %773 = vmax.xlane.f32.xlu0 %v735
      %v774 = vpop.xlane.xlu0 %773
      %775 = vmax.xlane.f32.xlu0 %v737
      %v776 = vpop.xlane.xlu0 %775
      %777 = vmax.xlane.f32.xlu0 %v740
      %v778 = vpop.xlane.xlu0 %777
      %779 = vmax.xlane.f32.xlu0 %v742
      %v780 = vpop.xlane.xlu0 %779
      %781 = vmax.xlane.f32.xlu0 %v745
      %v782 = vpop.xlane.xlu0 %781
      %783 = vmax.xlane.f32.xlu0 %v747
      %v784 = vpop.xlane.xlu0 %783
      %785 = vmax.xlane.f32.xlu0 %v750
      %v786 = vpop.xlane.xlu0 %785
      %787 = vmax.xlane.f32.xlu0 %v752
      %v788 = vpop.xlane.xlu0 %787
      %789 = vmax.xlane.f32.xlu0 %v755
      %v790 = vpop.xlane.xlu0 %789
      %791 = vmax.xlane.f32.xlu0 %v757
      %v792 = vpop.xlane.xlu0 %791
      %793 = vmax.xlane.f32.xlu0 %v760
      %v794 = vpop.xlane.xlu0 %793
      %795 = vmax.xlane.f32.xlu0 %v762
      %v796 = vpop.xlane.xlu0 %795
      %797 = vmax.xlane.f32.xlu0 %v765
      %v798 = vpop.xlane.xlu0 %797
      %799 = vmax.xlane.f32.xlu0 %v767
      %v800 = vpop.xlane.xlu0 %799
      %v801 = vsub.f32 %v730, %v770
      %v802 = vsub.f32 %v732, %v772
      %v803 = vsub.f32 %v735, %v774
      %v804 = vsub.f32 %v737, %v776
      %v805 = vsub.f32 %v740, %v778
      %v806 = vsub.f32 %v742, %v780
      %v807 = vsub.f32 %v745, %v782
      %v808 = vsub.f32 %v747, %v784
      %v809 = vsub.f32 %v750, %v786
      %v810 = vsub.f32 %v752, %v788
      %v811 = vsub.f32 %v755, %v790
      %v812 = vsub.f32 %v757, %v792
      %v813 = vsub.f32 %v760, %v794
      %v814 = vsub.f32 %v762, %v796
      %v815 = vsub.f32 %v765, %v798
      %v816 = vsub.f32 %v767, %v800
      %v817 = vpack.c.bf16 %v802, %v801
      %v818 = vpack.c.bf16 %v804, %v803
      %v819 = vpack.c.bf16 %v806, %v805
      %v820 = vpack.c.bf16 %v808, %v807
      %v821 = vpack.c.bf16 %v810, %v809
      %v822 = vpack.c.bf16 %v812, %v811
      %v823 = vpack.c.bf16 %v814, %v813
      %v824 = vpack.c.bf16 %v816, %v815
      %v825 = vunpack.c.l.bf16 %v817
      %v826 = vunpack.c.h.bf16 %v817
      %v827 = vunpack.c.l.bf16 %v818
      %v828 = vunpack.c.h.bf16 %v818
      %v829 = vunpack.c.l.bf16 %v819
      %v830 = vunpack.c.h.bf16 %v819
      %v831 = vunpack.c.l.bf16 %v820
      %v832 = vunpack.c.h.bf16 %v820
      %v833 = vunpack.c.l.bf16 %v821
      %v834 = vunpack.c.h.bf16 %v821
      %v835 = vunpack.c.l.bf16 %v822
      %v836 = vunpack.c.h.bf16 %v822
      %v837 = vunpack.c.l.bf16 %v823
      %v838 = vunpack.c.h.bf16 %v823
      %v839 = vunpack.c.l.bf16 %v824
      %v840 = vunpack.c.h.bf16 %v824
      %v841 = vmul.f32 %v825, 1.442695
      %v842 = vpow.pop %v841
      %v843 = vmul.f32 %v826, 1.442695
      %v844 = vpow.pop %v843
      %v845 = vmul.f32 %v827, 1.442695
      %v846 = vpow.pop %v845
      %v847 = vmul.f32 %v828, 1.442695
      %v848 = vpow.pop %v847
      %v849 = vmul.f32 %v829, 1.442695
      %v850 = vpow.pop %v849
      %v851 = vmul.f32 %v830, 1.442695
      %v852 = vpow.pop %v851
      %v853 = vmul.f32 %v831, 1.442695
      %v854 = vpow.pop %v853
      %v855 = vmul.f32 %v832, 1.442695
      %v856 = vpow.pop %v855
      %v857 = vmul.f32 %v833, 1.442695
      %v858 = vpow.pop %v857
      %v859 = vmul.f32 %v834, 1.442695
      %v860 = vpow.pop %v859
      %v861 = vmul.f32 %v835, 1.442695
      %v862 = vpow.pop %v861
      %v863 = vmul.f32 %v836, 1.442695
      %v864 = vpow.pop %v863
      %v865 = vmul.f32 %v837, 1.442695
      %v866 = vpow.pop %v865
      %v867 = vmul.f32 %v838, 1.442695
      %v868 = vpow.pop %v867
      %v869 = vmul.f32 %v839, 1.442695
      %v870 = vpow.pop %v869
      %v871 = vmul.f32 %v840, 1.442695
      %v872 = vpow.pop %v871
      %v873 = vpack.c.bf16 %v844, %v842
      %v874 = vpack.c.bf16 %v848, %v846
      %v875 = vpack.c.bf16 %v852, %v850
      %v876 = vpack.c.bf16 %v856, %v854
      %v877 = vpack.c.bf16 %v860, %v858
      %v878 = vpack.c.bf16 %v864, %v862
      %v879 = vpack.c.bf16 %v868, %v866
      %v880 = vpack.c.bf16 %v872, %v870
      %v881 = vunpack.c.l.bf16 %v873
      %v882 = vunpack.c.h.bf16 %v873
      %v883 = vunpack.c.l.bf16 %v874
      %v884 = vunpack.c.h.bf16 %v874
      %v885 = vunpack.c.l.bf16 %v875
      %v886 = vunpack.c.h.bf16 %v875
      %v887 = vunpack.c.l.bf16 %v876
      %v888 = vunpack.c.h.bf16 %v876
      %v889 = vunpack.c.l.bf16 %v877
      %v890 = vunpack.c.h.bf16 %v877
      %v891 = vunpack.c.l.bf16 %v878
      %v892 = vunpack.c.h.bf16 %v878
      %v893 = vunpack.c.l.bf16 %v879
      %v894 = vunpack.c.h.bf16 %v879
      %v895 = vunpack.c.l.bf16 %v880
      %v896 = vunpack.c.h.bf16 %v880
      %897 = vadd.xlane.f32.xlu0 %v881
      %v898 = vpop.xlane.xlu0 %897
      %899 = vadd.xlane.f32.xlu0 %v882
      %v900 = vpop.xlane.xlu0 %899
      %901 = vadd.xlane.f32.xlu0 %v883
      %v902 = vpop.xlane.xlu0 %901
      %903 = vadd.xlane.f32.xlu0 %v884
      %v904 = vpop.xlane.xlu0 %903
      %905 = vadd.xlane.f32.xlu0 %v885
      %v906 = vpop.xlane.xlu0 %905
      %907 = vadd.xlane.f32.xlu0 %v886
      %v908 = vpop.xlane.xlu0 %907
      %909 = vadd.xlane.f32.xlu0 %v887
      %v910 = vpop.xlane.xlu0 %909
      %911 = vadd.xlane.f32.xlu0 %v888
      %v912 = vpop.xlane.xlu0 %911
      %913 = vadd.xlane.f32.xlu0 %v889
      %v914 = vpop.xlane.xlu0 %913
      %915 = vadd.xlane.f32.xlu0 %v890
      %v916 = vpop.xlane.xlu0 %915
      %917 = vadd.xlane.f32.xlu0 %v891
      %v918 = vpop.xlane.xlu0 %917
      %919 = vadd.xlane.f32.xlu0 %v892
      %v920 = vpop.xlane.xlu0 %919
      %921 = vadd.xlane.f32.xlu0 %v893
      %v922 = vpop.xlane.xlu0 %921
      %923 = vadd.xlane.f32.xlu0 %v894
      %v924 = vpop.xlane.xlu0 %923
      %925 = vadd.xlane.f32.xlu0 %v895
      %v926 = vpop.xlane.xlu0 %925
      %927 = vadd.xlane.f32.xlu0 %v896
      %v928 = vpop.xlane.xlu0 %927
      %v929 = vrcp.pop %v898
      %v930 = vmul.f32 %v898, %v929
      %v931 = vsub.f32 1.0, %v930
      %v932 = vmul.f32 %v929, %v931
      %v933 = vadd.f32 %v929, %v932
      %vm934 = vweird.f32 %v898
      %vm935 = vweird.f32 %v929
      %vm936 = vmor %vm934, %vm935
      %v937 = vsel %vm936, %v929, %v933
      %v938 = vand.u32 2147483647, %v898
      %vm939 = vcmp.eq.f32.partialorder %v938, 8.507059e+37
      %v940 = vand.u32 %v898, 2147483648
      %v941 = vor.u32 1.1754944e-38, %v940
      %v942 = vsel %vm939, %v941, %v937
      %v943 = vmul.f32 1.0, %v942
      %v944 = vrcp.pop %v900
      %v945 = vmul.f32 %v900, %v944
      %v946 = vsub.f32 1.0, %v945
      %v947 = vmul.f32 %v944, %v946
      %v948 = vadd.f32 %v944, %v947
      %vm949 = vweird.f32 %v900
      %vm950 = vweird.f32 %v944
      %vm951 = vmor %vm949, %vm950
      %v952 = vsel %vm951, %v944, %v948
      %v953 = vand.u32 2147483647, %v900
      %vm954 = vcmp.eq.f32.partialorder %v953, 8.507059e+37
      %v955 = vand.u32 %v900, 2147483648
      %v956 = vor.u32 1.1754944e-38, %v955
      %v957 = vsel %vm954, %v956, %v952
      %v958 = vmul.f32 1.0, %v957
      %v959 = vrcp.pop %v902
      %v960 = vmul.f32 %v902, %v959
      %v961 = vsub.f32 1.0, %v960
      %v962 = vmul.f32 %v959, %v961
      %v963 = vadd.f32 %v959, %v962
      %vm964 = vweird.f32 %v902
      %vm965 = vweird.f32 %v959
      %vm966 = vmor %vm964, %vm965
      %v967 = vsel %vm966, %v959, %v963
      %v968 = vand.u32 2147483647, %v902
      %vm969 = vcmp.eq.f32.partialorder %v968, 8.507059e+37
      %v970 = vand.u32 %v902, 2147483648
      %v971 = vor.u32 1.1754944e-38, %v970
      %v972 = vsel %vm969, %v971, %v967
      %v973 = vmul.f32 1.0, %v972
      %v974 = vrcp.pop %v904
      %v975 = vmul.f32 %v904, %v974
      %v976 = vsub.f32 1.0, %v975
      %v977 = vmul.f32 %v974, %v976
      %v978 = vadd.f32 %v974, %v977
      %vm979 = vweird.f32 %v904
      %vm980 = vweird.f32 %v974
      %vm981 = vmor %vm979, %vm980
      %v982 = vsel %vm981, %v974, %v978
      %v983 = vand.u32 2147483647, %v904
      %vm984 = vcmp.eq.f32.partialorder %v983, 8.507059e+37
      %v985 = vand.u32 %v904, 2147483648
      %v986 = vor.u32 1.1754944e-38, %v985
      %v987 = vsel %vm984, %v986, %v982
      %v988 = vmul.f32 1.0, %v987
      %v989 = vrcp.pop %v906
      %v990 = vmul.f32 %v906, %v989
      %v991 = vsub.f32 1.0, %v990
      %v992 = vmul.f32 %v989, %v991
      %v993 = vadd.f32 %v989, %v992
      %vm994 = vweird.f32 %v906
      %vm995 = vweird.f32 %v989
      %vm996 = vmor %vm994, %vm995
      %v997 = vsel %vm996, %v989, %v993
      %v998 = vand.u32 2147483647, %v906
      %vm999 = vcmp.eq.f32.partialorder %v998, 8.507059e+37
      %v1000 = vand.u32 %v906, 2147483648
      %v1001 = vor.u32 1.1754944e-38, %v1000
      %v1002 = vsel %vm999, %v1001, %v997
      %v1003 = vmul.f32 1.0, %v1002
      %v1004 = vrcp.pop %v908
      %v1005 = vmul.f32 %v908, %v1004
      %v1006 = vsub.f32 1.0, %v1005
      %v1007 = vmul.f32 %v1004, %v1006
      %v1008 = vadd.f32 %v1004, %v1007
      %vm1009 = vweird.f32 %v908
      %vm1010 = vweird.f32 %v1004
      %vm1011 = vmor %vm1009, %vm1010
      %v1012 = vsel %vm1011, %v1004, %v1008
      %v1013 = vand.u32 2147483647, %v908
      %vm1014 = vcmp.eq.f32.partialorder %v1013, 8.507059e+37
      %v1015 = vand.u32 %v908, 2147483648
      %v1016 = vor.u32 1.1754944e-38, %v1015
      %v1017 = vsel %vm1014, %v1016, %v1012
      %v1018 = vmul.f32 1.0, %v1017
      %v1019 = vrcp.pop %v910
      %v1020 = vmul.f32 %v910, %v1019
      %v1021 = vsub.f32 1.0, %v1020
      %v1022 = vmul.f32 %v1019, %v1021
      %v1023 = vadd.f32 %v1019, %v1022
      %vm1024 = vweird.f32 %v910
      %vm1025 = vweird.f32 %v1019
      %vm1026 = vmor %vm1024, %vm1025
      %v1027 = vsel %vm1026, %v1019, %v1023
      %v1028 = vand.u32 2147483647, %v910
      %vm1029 = vcmp.eq.f32.partialorder %v1028, 8.507059e+37
      %v1030 = vand.u32 %v910, 2147483648
      %v1031 = vor.u32 1.1754944e-38, %v1030
      %v1032 = vsel %vm1029, %v1031, %v1027
      %v1033 = vmul.f32 1.0, %v1032
      %v1034 = vrcp.pop %v912
      %v1035 = vmul.f32 %v912, %v1034
      %v1036 = vsub.f32 1.0, %v1035
      %v1037 = vmul.f32 %v1034, %v1036
      %v1038 = vadd.f32 %v1034, %v1037
      %vm1039 = vweird.f32 %v912
      %vm1040 = vweird.f32 %v1034
      %vm1041 = vmor %vm1039, %vm1040
      %v1042 = vsel %vm1041, %v1034, %v1038
      %v1043 = vand.u32 2147483647, %v912
      %vm1044 = vcmp.eq.f32.partialorder %v1043, 8.507059e+37
      %v1045 = vand.u32 %v912, 2147483648
      %v1046 = vor.u32 1.1754944e-38, %v1045
      %v1047 = vsel %vm1044, %v1046, %v1042
      %v1048 = vmul.f32 1.0, %v1047
      %v1049 = vrcp.pop %v914
      %v1050 = vmul.f32 %v914, %v1049
      %v1051 = vsub.f32 1.0, %v1050
      %v1052 = vmul.f32 %v1049, %v1051
      %v1053 = vadd.f32 %v1049, %v1052
      %vm1054 = vweird.f32 %v914
      %vm1055 = vweird.f32 %v1049
      %vm1056 = vmor %vm1054, %vm1055
      %v1057 = vsel %vm1056, %v1049, %v1053
      %v1058 = vand.u32 2147483647, %v914
      %vm1059 = vcmp.eq.f32.partialorder %v1058, 8.507059e+37
      %v1060 = vand.u32 %v914, 2147483648
      %v1061 = vor.u32 1.1754944e-38, %v1060
      %v1062 = vsel %vm1059, %v1061, %v1057
      %v1063 = vmul.f32 1.0, %v1062
      %v1064 = vrcp.pop %v916
      %v1065 = vmul.f32 %v916, %v1064
      %v1066 = vsub.f32 1.0, %v1065
      %v1067 = vmul.f32 %v1064, %v1066
      %v1068 = vadd.f32 %v1064, %v1067
      %vm1069 = vweird.f32 %v916
      %vm1070 = vweird.f32 %v1064
      %vm1071 = vmor %vm1069, %vm1070
      %v1072 = vsel %vm1071, %v1064, %v1068
      %v1073 = vand.u32 2147483647, %v916
      %vm1074 = vcmp.eq.f32.partialorder %v1073, 8.507059e+37
      %v1075 = vand.u32 %v916, 2147483648
      %v1076 = vor.u32 1.1754944e-38, %v1075
      %v1077 = vsel %vm1074, %v1076, %v1072
      %v1078 = vmul.f32 1.0, %v1077
      %v1079 = vrcp.pop %v918
      %v1080 = vmul.f32 %v918, %v1079
      %v1081 = vsub.f32 1.0, %v1080
      %v1082 = vmul.f32 %v1079, %v1081
      %v1083 = vadd.f32 %v1079, %v1082
      %vm1084 = vweird.f32 %v918
      %vm1085 = vweird.f32 %v1079
      %vm1086 = vmor %vm1084, %vm1085
      %v1087 = vsel %vm1086, %v1079, %v1083
      %v1088 = vand.u32 2147483647, %v918
      %vm1089 = vcmp.eq.f32.partialorder %v1088, 8.507059e+37
      %v1090 = vand.u32 %v918, 2147483648
      %v1091 = vor.u32 1.1754944e-38, %v1090
      %v1092 = vsel %vm1089, %v1091, %v1087
      %v1093 = vmul.f32 1.0, %v1092
      %v1094 = vrcp.pop %v920
      %v1095 = vmul.f32 %v920, %v1094
      %v1096 = vsub.f32 1.0, %v1095
      %v1097 = vmul.f32 %v1094, %v1096
      %v1098 = vadd.f32 %v1094, %v1097
      %vm1099 = vweird.f32 %v920
      %vm1100 = vweird.f32 %v1094
      %vm1101 = vmor %vm1099, %vm1100
      %v1102 = vsel %vm1101, %v1094, %v1098
      %v1103 = vand.u32 2147483647, %v920
      %vm1104 = vcmp.eq.f32.partialorder %v1103, 8.507059e+37
      %v1105 = vand.u32 %v920, 2147483648
      %v1106 = vor.u32 1.1754944e-38, %v1105
      %v1107 = vsel %vm1104, %v1106, %v1102
      %v1108 = vmul.f32 1.0, %v1107
      %v1109 = vrcp.pop %v922
      %v1110 = vmul.f32 %v922, %v1109
      %v1111 = vsub.f32 1.0, %v1110
      %v1112 = vmul.f32 %v1109, %v1111
      %v1113 = vadd.f32 %v1109, %v1112
      %vm1114 = vweird.f32 %v922
      %vm1115 = vweird.f32 %v1109
      %vm1116 = vmor %vm1114, %vm1115
      %v1117 = vsel %vm1116, %v1109, %v1113
      %v1118 = vand.u32 2147483647, %v922
      %vm1119 = vcmp.eq.f32.partialorder %v1118, 8.507059e+37
      %v1120 = vand.u32 %v922, 2147483648
      %v1121 = vor.u32 1.1754944e-38, %v1120
      %v1122 = vsel %vm1119, %v1121, %v1117
      %v1123 = vmul.f32 1.0, %v1122
      %v1124 = vrcp.pop %v924
      %v1125 = vmul.f32 %v924, %v1124
      %v1126 = vsub.f32 1.0, %v1125
      %v1127 = vmul.f32 %v1124, %v1126
      %v1128 = vadd.f32 %v1124, %v1127
      %vm1129 = vweird.f32 %v924
      %vm1130 = vweird.f32 %v1124
      %vm1131 = vmor %vm1129, %vm1130
      %v1132 = vsel %vm1131, %v1124, %v1128
      %v1133 = vand.u32 2147483647, %v924
      %vm1134 = vcmp.eq.f32.partialorder %v1133, 8.507059e+37
      %v1135 = vand.u32 %v924, 2147483648
      %v1136 = vor.u32 1.1754944e-38, %v1135
      %v1137 = vsel %vm1134, %v1136, %v1132
      %v1138 = vmul.f32 1.0, %v1137
      %v1139 = vrcp.pop %v926
      %v1140 = vmul.f32 %v926, %v1139
      %v1141 = vsub.f32 1.0, %v1140
      %v1142 = vmul.f32 %v1139, %v1141
      %v1143 = vadd.f32 %v1139, %v1142
      %vm1144 = vweird.f32 %v926
      %vm1145 = vweird.f32 %v1139
      %vm1146 = vmor %vm1144, %vm1145
      %v1147 = vsel %vm1146, %v1139, %v1143
      %v1148 = vand.u32 2147483647, %v926
      %vm1149 = vcmp.eq.f32.partialorder %v1148, 8.507059e+37
      %v1150 = vand.u32 %v926, 2147483648
      %v1151 = vor.u32 1.1754944e-38, %v1150
      %v1152 = vsel %vm1149, %v1151, %v1147
      %v1153 = vmul.f32 1.0, %v1152
      %v1154 = vrcp.pop %v928
      %v1155 = vmul.f32 %v928, %v1154
      %v1156 = vsub.f32 1.0, %v1155
      %v1157 = vmul.f32 %v1154, %v1156
      %v1158 = vadd.f32 %v1154, %v1157
      %vm1159 = vweird.f32 %v928
      %vm1160 = vweird.f32 %v1154
      %vm1161 = vmor %vm1159, %vm1160
      %v1162 = vsel %vm1161, %v1154, %v1158
      %v1163 = vand.u32 2147483647, %v928
      %vm1164 = vcmp.eq.f32.partialorder %v1163, 8.507059e+37
      %v1165 = vand.u32 %v928, 2147483648
      %v1166 = vor.u32 1.1754944e-38, %v1165
      %v1167 = vsel %vm1164, %v1166, %v1162
      %v1168 = vmul.f32 1.0, %v1167
      %1169 = vxpose.xlu0.b32.start [1/16] %v943, 128
      %1170 = vxpose.xlu0.b32.cont [2/16] %v958, 128
      %1171 = vxpose.xlu0.b32.cont [3/16] %v973, 128
      %1172 = vxpose.xlu0.b32.cont [4/16] %v988, 128
      %1173 = vxpose.xlu0.b32.cont [5/16] %v1003, 128
      %1174 = vxpose.xlu0.b32.cont [6/16] %v1018, 128
      %1175 = vxpose.xlu0.b32.cont [7/16] %v1033, 128
      %1176 = vxpose.xlu0.b32.cont [8/16] %v1048, 128
      %1177 = vxpose.xlu0.b32.cont [9/16] %v1063, 128
      %1178 = vxpose.xlu0.b32.cont [10/16] %v1078, 128
      %1179 = vxpose.xlu0.b32.cont [11/16] %v1093, 128
      %1180 = vxpose.xlu0.b32.cont [12/16] %v1108, 128
      %1181 = vxpose.xlu0.b32.cont [13/16] %v1123, 128
      %1182 = vxpose.xlu0.b32.cont [14/16] %v1138, 128
      %1183 = vxpose.xlu0.b32.cont [15/16] %v1153, 128
      %1184 = vxpose.xlu0.b32.end [16/16] %v1168, 128
      %v1185 = vpop.trf.xlu0
      %v1186 = vpop.trf.xlu0
      %v1187 = vpop.trf.xlu0
      %v1188 = vpop.trf.xlu0
      %v1189 = vpop.trf.xlu0
      %v1190 = vpop.trf.xlu0
      %v1191 = vpop.trf.xlu0
      %v1192 = vpop.trf.xlu0
      %v1193 = vpop.trf.xlu0
      %v1194 = vpop.trf.xlu0
      %v1195 = vpop.trf.xlu0
      %v1196 = vpop.trf.xlu0
      %v1197 = vpop.trf.xlu0
      %v1198 = vpop.trf.xlu0
      %v1199 = vpop.trf.xlu0
      %v1200 = vpop.trf.xlu0
      %s1201 = scalar_lea.vmem [#allocation3], %s659
      %v1202 = vld [vmem:[%s1201] sm:$0x7]
      %v1203 = vperm.slane %v1185, 0
      %v1204 = vmul.f32 %v1202, %v1203
      %v1206 = vrot.slane %v1185, 5
      %vm1208 = vcmask 1042432
      %v1209 = vsel %vm1208, %v1204, %v1206
      %v1210 = vld [vmem:[#allocation4] sm:$0xf]
      %v1211 = vpack.c.bf16 %v1209, %v1209
      %1212 = vmatpush.bf16.msra.mxu0 %v880
      %1213 = vmatpush.bf16.msra.mxu0 %v879
      %1214 = vmatpush.bf16.msra.mxu0 %v878
      %1215 = vmatpush.bf16.msra.mxu0 %v877
      %1216 = vmatpush.bf16.msra.mxu0 %v876
      %1217 = vmatpush.bf16.msra.mxu0 %v875
      %1218 = vmatpush.bf16.msra.mxu0 %v874
      %1219 = vmatpush.bf16.msra.mxu0 %v873
      %1220 = vmatmul.bf16.gmra.mxu0 %v1211
      %v1221 = vpop.f32.mrf.mxu0
      %v1222 = vadd.f32 0.0, %v1221
      %v1223 = vpop.f32.mrf.mxu0
      %1224 = vdwg.mxu0
      %v1225 = vadd.f32 %v1210, %v1222
      %1226 = vst [vmem:[#allocation4] sm:$0xf] %v1225
      // Predicated region
      $region53: #{tpu_custom_call.1} parent=47 // pred_check
        %p1227 = pneg %p288
      $region54: #{tpu_custom_call.1} parent=47 // pred_check_branch
        %1229 = sbr.rel (%p1227) target = $region56
      $region55: #{tpu_custom_call.1} parent=47 // pred_region
        %s1230 = sld [smem:[#allocation5]]
        %v1231 = vld [vmem:[#allocation4] sm:$0xf]
        %v1232 = vadd.f32 %v1231, 1e-09
        %v1233 = vrcp.pop %v1232
        %v1234 = vmul.f32 %v1232, %v1233
        %v1235 = vsub.f32 1.0, %v1234
        %v1236 = vmul.f32 %v1233, %v1235
        %v1237 = vadd.f32 %v1233, %v1236
        %vm1238 = vweird.f32 %v1232
        %vm1239 = vweird.f32 %v1233
        %vm1240 = vmor %vm1238, %vm1239
        %v1241 = vsel %vm1240, %v1233, %v1237
        %v1242 = vand.u32 2147483647, %v1232
        %vm1243 = vcmp.eq.f32.partialorder %v1242, 8.507059e+37
        %v1244 = vand.u32 %v1232, 2147483648
        %v1245 = vor.u32 1.1754944e-38, %v1244
        %v1246 = vsel %vm1243, %v1245, %v1241
        %v1247 = vmul.f32 1.0, %v1246
        %v1248 = vperm.slane %v1247, 3
        %v1249 = vmul.f32 %v1231, %v1248
        %v1250 = vstv %s1230
        %v1251 = vmul.f32 %v1250, %v1249
        %v1252 = vld [vmem:[%s282] sm:$0x7]
        %v1253 = vadd.f32 %v1251, %v1252
        %1254 = vst [vmem:[%s286] sm:$0x7] %v1253
      $region56: #{tpu_custom_call.1} parent=47 // pred_fallthru
        _
      %p1255 = scmp.lt.s32.totalorder %s23, 1
      %s1256 = scalar_select %p1255, %s23, 1
      %s1257 = smul.addr %s1256, 4
      %s1258 = scalar_lea.vmem %s7, %s1257
      // Predicated region
      $region57: #{tpu_custom_call.1} parent=47 // pred_check
        %p1259 = pneg %p201
      $region58: #{tpu_custom_call.1} parent=47 // pred_check_branch
        %1261 = sbr.rel (%p1259) target = $region60
      $region59: #{tpu_custom_call.1} parent=47 // pred_region
        _
      $region60: #{tpu_custom_call.1} parent=47 // pred_fallthru
        _
    $region48: #{tpu_custom_call.1} parent=5 // pred_fallthru
      _
    %p1262 = scmp.le.s32.totalorder 2, %s14
    // Predicated region
    $region61: #{tpu_custom_call.1} parent=5 // pred_check
      %p1263 = pneg %p1262
    $region62: #{tpu_custom_call.1} parent=5 // pred_check_branch
      %1265 = sbr.rel (%p1263) target = $region64
    $region63: #{tpu_custom_call.1} parent=5 // pred_region
      %s1266 = ssub.s32 %s14, 2
      // Predicated region
      $region65: #{tpu_custom_call.1} parent=63 // pred_check
        %p1267 = pneg %p207
      $region66: #{tpu_custom_call.1} parent=63 // pred_check_branch
        %1269 = sbr.rel (%p1267) target = $region68
      $region67: #{tpu_custom_call.1} parent=63 // pred_region
        %p1270 = scmp.lt.s32.totalorder %s25, 1
        %s1271 = scalar_select %p1270, %s25, 1
        %s1272 = smul.addr %s1271, 4
        %s1273 = scalar_lea.vmem %s7, %s1272
      $region68: #{tpu_custom_call.1} parent=63 // pred_fallthru
        _
    $region64: #{tpu_custom_call.1} parent=5 // pred_fallthru
      _
  $region6: #{tpu_custom_call.1} parent=0 // loop_footer
    %s18 = sadd.s32 1, %s14
  $region7: #{tpu_custom_call.1} parent=0 // loop_footer_branch
    %13 = sbr.rel target = $region3
  $region8: #{tpu_custom_call.1} parent=0 // loop_exit
    _

</llo_original>
